<compile_context>
chip_gen: v7x
topology: tpu7x:2x2x1
jax: 0.10.0
libtpu: 0.0.40
codegen_flags: <defaults>
</compile_context>

<pallas_src>
import jax
import jax.numpy as jnp
from jax.experimental import pallas as pl
from jax.experimental.pallas import tpu as pltpu

N_NEURONS = 20
N_CLASSES = 3
T_FEATS = 16     # per-neuron time-series / shift features fed to the edge MLP
HIDDEN = 32      # edge-MLP hidden width

_F32 = jnp.float32
_VMEM_SPEC = pl.BlockSpec(memory_space=pltpu.MemorySpace.VMEM)

# lane offsets inside the packed bias row (1, 128)
_B1_LO, _B1_HI = 0, HIDDEN                                    # edge-MLP hidden bias (32)
_BC1_LO, _BC1_HI = _B1_HI, _B1_HI + N_NEURONS                 # classifier-1 bias, b2 folded (20)
_BC2_LO, _BC2_HI = _BC1_HI, _BC1_HI + N_CLASSES * N_NEURONS   # classifier-2 bias, plane-permuted (60)
_BIAS_PACK_LANES = 128


# ---------------------------------------------------------------------------
# Fused kernel: edge MLP -> (N,N) edge matrix -> classifier -> softmax -> interleave
# ---------------------------------------------------------------------------
def _edge_classifier_kernel(x_ref, whid_ref, bias_ref, w2blk_ref, wcls_ref, pint_ref, out_ref):
    n, h = N_NEURONS, HIDDEN

    x = x_ref[...]                                   # (20, 16)
    whid = whid_ref[...]                             # (16, 672) = [ tile(W1a, 20) | W1b ]
    bias = bias_ref[...]                             # (1, 128)  = [ b1 | bc1' | bc2p | pad ]
    wcls = wcls_ref[...]                             # (20, 80)  = [ wc1 | wc2 plane-permuted ]

    b1 = bias[:, _B1_LO:_B1_HI]                      # (1, 32)
    bc1 = bias[:, _BC1_LO:_BC1_HI]                   # (1, 20)  (b2 already folded in)
    bc2 = bias[:, _BC2_LO:_BC2_HI]                   # (1, 60)

    # --- EdgeRegressor message MLP, concat-matmul factorized and lane-dense ------------
    #   cat(x_i, x_j) @ W1 == x_i @ W1a + x_j @ W1b
    # a_wide column j*32+k = A[i, k]  (W1a tiled 20x along columns at prepare time)
    a_wide = jnp.dot(x, whid[:, : n * h], preferred_element_type=_F32)       # (20, 640) MXU
    b = jnp.dot(x, whid[:, n * h:], preferred_element_type=_F32) + b1        # (20, 32)  MXU
    # flatten B to a single lane-dense row: lane j*32+k = B[j, k] + b1[k]
    b_row = jnp.concatenate([b[j:j + 1, :] for j in range(n)], axis=1)       # (1, 640)
    hidden = jnp.maximum(a_wide + b_row, 0.0)                                # (20, 640) = 15 vregs

    # scalar head on the MXU: block-diagonal w2 -> e[i, j] (b2 folded into bc1')
    e = jnp.dot(hidden, w2blk_ref[...], preferred_element_type=_F32)         # (20, 20)

    # --- classifier: Linear(N,N) -> ReLU -> Linear(N, 3N) (class planes contiguous) ----
    h2 = jnp.maximum(jnp.dot(e, wcls[:, :n], preferred_element_type=_F32) + bc1, 0.0)
    logits = jnp.dot(h2, wcls[:, n:], preferred_element_type=_F32) + bc2     # (20, 60) planes

    # --- softmax over the 3 class planes ------------------------------------------------
    l0 = logits[:, :n]
    l1 = logits[:, n:2 * n]
    l2 = logits[:, 2 * n:]
    m = jnp.maximum(jnp.maximum(l0, l1), l2)                                 # (20, 20)
    ex = jnp.exp(logits - jnp.concatenate([m, m, m], axis=1))                # (20, 60) EUP
    s = ex[:, :n] + ex[:, n:2 * n] + ex[:, 2 * n:]
    # exact reciprocal: denominator is only 3 vregs, approx=True (EUP) saves nothing
    # measurable here and keeps bit-level agreement with jax.nn.softmax at 1e-4.
    inv = pl.reciprocal(s, approx=False)
    probs = ex * jnp.concatenate([inv, inv, inv], axis=1)                    # (20, 60) planes

    # --- interleave planes -> (i, j*3+c) with a 0/1 matmul on the idle MXU ---------------
    out_ref[...] = jnp.dot(probs, pint_ref[...], preferred_element_type=_F32)  # (20, 60)


# ---------------------------------------------------------------------------
# One-time parameter repacking (NOT per-call work)
# ---------------------------------------------------------------------------
def prepare_params(params):
    n, c, h, t = N_NEURONS, N_CLASSES, HIDDEN, T_FEATS

    w1a = params["w1"][:t]                                      # (16, 32) rows acting on x_i
    w1b = params["w1"][t:]                                      # (16, 32) rows acting on x_j
    whid = jnp.concatenate([jnp.tile(w1a, (1, n)), w1b], axis=1)            # (16, 672)

    # block-diagonal copy of w2: w2blk[j*32+k, j] = w2[k]
    w2blk = jnp.kron(jnp.eye(n, dtype=_F32), params["w2"])                   # (640, 20)

    # fold b2 (edge-MLP output bias, broadcast over all (i,j)) into the classifier-1 bias
    b2 = params["b2"][0, 0]
    bc1_eff = params["bc1"] + b2 * jnp.sum(params["wc1"], axis=0, keepdims=True)   # (1, 20)

    # class-plane permutation: perm[c*N + j] = j*N_CLASSES + c (planes become contiguous cols)
    perm = jnp.arange(c * n).reshape(n, c).T.reshape(-1)
    wcls = jnp.concatenate([params["wc1"], params["wc2"][:, perm]], axis=1)  # (20, 80)

    pad = jnp.zeros((1, _BIAS_PACK_LANES - (h + n + c * n)), _F32)
    bias_pack = jnp.concatenate([params["b1"], bc1_eff, params["bc2"][:, perm], pad], axis=1)

    # plane layout -> interleaved (j*3+c) layout, applied after softmax on the idle MXU
    pint = jax.nn.one_hot(perm, c * n, dtype=_F32)                           # (60, 60)

    return {"whid": whid, "bias": bias_pack, "w2blk": w2blk, "wcls": wcls, "pint": pint}


# ---------------------------------------------------------------------------
# Forward: single sample (no grid) and batched (grid over B, "parallel" for v7x)
# ---------------------------------------------------------------------------
@jax.jit
def edge_classifier_forward(x, edge_index, prepped):
    # TODO(synk): edge_index is ignored — the model is defined on the dense all-pairs graph.
    del edge_index
    out = pl.pallas_call(
        _edge_classifier_kernel,
        out_shape=jax.ShapeDtypeStruct((N_NEURONS, N_CLASSES * N_NEURONS), _F32),
        in_specs=[_VMEM_SPEC] * 6,
        out_specs=_VMEM_SPEC,
    )(x, prepped["whid"], prepped["bias"], prepped["w2blk"], prepped["wcls"], prepped["pint"])
    # contiguous reshape: (20, 60) -> (20, 20, 3), zero data movement, fused under jit.
    return out.reshape(N_NEURONS, N_NEURONS, N_CLASSES)


@jax.jit
def edge_classifier_forward_batched(xb, prepped):
    n, c, t, h = N_NEURONS, N_CLASSES, T_FEATS, HIDDEN
    bsz = xb.shape[0]

    def wspec(shape):
        return pl.BlockSpec(shape, lambda b, _s=len(shape): (0,) * _s)

    out = pl.pallas_call(
        _edge_classifier_kernel,
        out_shape=jax.ShapeDtypeStruct((bsz, n, c * n), _F32),
        grid=(bsz,),
        in_specs=[
            pl.BlockSpec((None, n, t), lambda b: (b, 0, 0)),      # per-sample x
            wspec((t, n * h + h)),                                 # weights: constant index_map
            wspec((1, _BIAS_PACK_LANES)),
            wspec((n * h, n)),
            wspec((n, n + c * n)),
            wspec((c * n, c * n)),
        ],
        out_specs=pl.BlockSpec((None, n, c * n), lambda b: (b, 0, 0)),
        compiler_params=pltpu.CompilerParams(dimension_semantics=("parallel",)),
    )(xb, prepped["whid"], prepped["bias"], prepped["w2blk"], prepped["wcls"], prepped["pint"])
    return out.reshape(bsz, n, n, c)


# ---------------------------------------------------------------------------
# Parameters + pure-JAX reference (spec semantics)
# ---------------------------------------------------------------------------
def init_params(key):
    ks = jax.random.split(key, 8)

    def lin(kw, fan_in, fan_out):
        scale = 1.0 / jnp.sqrt(jnp.float32(fan_in))
        return jax.random.normal(kw, (fan_in, fan_out), _F32) * scale

    return {
        # EdgeRegressor message MLP: 2T -> HIDDEN -> 1
        "w1": lin(ks[0], 2 * T_FEATS, HIDDEN),
        "b1": jax.random.normal(ks[1], (1, HIDDEN), _F32) * 0.01,
        "w2": lin(ks[2], HIDDEN, 1),
        "b2": jax.random.normal(ks[3], (1, 1), _F32) * 0.01,
        # classifier: Linear(N, N) -> ReLU -> Linear(N, N_CLASSES * N)
        "wc1": lin(ks[4], N_NEURONS, N_NEURONS),
        "bc1": jax.random.normal(ks[5], (1, N_NEURONS), _F32) * 0.01,
        "wc2": lin(ks[6], N_NEURONS, N_CLASSES * N_NEURONS),
        "bc2": jax.random.normal(ks[7], (1, N_CLASSES * N_NEURONS), _F32) * 0.01,
    }


def reference_forward(x, params):
    n = x.shape[0]
    xi = jnp.repeat(x, n, axis=0)
    xj = jnp.tile(x, (n, 1))
    pf = jnp.concatenate([xi, xj], axis=1)
    h = jnp.maximum(pf @ params["w1"] + params["b1"], 0.0)
    e = (h @ params["w2"] + params["b2"]).reshape(n, n)
    h2 = jnp.maximum(e @ params["wc1"] + params["bc1"], 0.0)
    logits = (h2 @ params["wc2"] + params["bc2"]).reshape(n, n, N_CLASSES)
    return jax.nn.softmax(logits, axis=2)


if __name__ == "__main__":
    key = jax.random.PRNGKey(0)
    k_x, k_p, k_b = jax.random.split(key, 3)

    x = jax.random.normal(k_x, (N_NEURONS, T_FEATS), _F32)
    # dense all-pairs edge index (fidelity to the dataset's `other_inputs`; unused directly)
    ii, jj = jnp.meshgrid(jnp.arange(N_NEURONS), jnp.arange(N_NEURONS), indexing="ij")
    edge_index = jnp.stack([ii.reshape(-1), jj.reshape(-1)], axis=0).astype(jnp.int32)

    params = init_params(k_p)
    prepped = prepare_params(params)   # one-time repack (W1 split+tile, b2 fold, plane permute)

    # --- single-sample path (module contract) ---
    out = edge_classifier_forward(x, edge_index, prepped)
    out = jax.block_until_ready(out)
    ref = reference_forward(x, params)
    assert out.shape == (N_NEURONS, N_NEURONS, N_CLASSES)
    assert bool(jnp.all(jnp.isfinite(out)))
    assert bool(jnp.allclose(jnp.sum(out, axis=2), 1.0, atol=1e-5))
    assert bool(jnp.allclose(out, ref, atol=1e-4, rtol=1e-4))

    # --- batched path (amortizes launch overhead; engages both TCs on v7x) ---
    xb = jax.random.normal(k_b, (4, N_NEURONS, T_FEATS), _F32)
    outb = jax.block_until_ready(edge_classifier_forward_batched(xb, prepped))
    refb = jnp.stack([reference_forward(xb[i], params) for i in range(xb.shape[0])])
    assert outb.shape == (4, N_NEURONS, N_NEURONS, N_CLASSES)
    assert bool(jnp.allclose(outb, refb, atol=1e-4, rtol=1e-4))

    print("KERNEL_OK")
</pallas_src>

<mosaic_0001>
module attributes {stable_mosaic.version = 11 : i64} {
  func.func @_edge_classifier_kernel(%arg0: memref<20x16xf32, #tpu.memory_space<vmem>>, %arg1: memref<16x672xf32, #tpu.memory_space<vmem>>, %arg2: memref<1x128xf32, #tpu.memory_space<vmem>>, %arg3: memref<640x20xf32, #tpu.memory_space<vmem>>, %arg4: memref<20x80xf32, #tpu.memory_space<vmem>>, %arg5: memref<60x60xf32, #tpu.memory_space<vmem>>, %arg6: memref<20x60xf32, #tpu.memory_space<vmem>>) attributes {dimension_semantics = [], scalar_prefetch = 0 : i64, scratch_operands = 0 : i64, tpu.core_type = #tpu.core_type<tc>} {
    %c0 = arith.constant 0 : index
    %c0_0 = arith.constant 0 : index
    %0 = vector.load %arg0[%c0, %c0_0] : memref<20x16xf32, #tpu.memory_space<vmem>>, vector<20x16xf32>
    %c0_1 = arith.constant 0 : index
    %c0_2 = arith.constant 0 : index
    %1 = vector.load %arg1[%c0_1, %c0_2] : memref<16x672xf32, #tpu.memory_space<vmem>>, vector<16x672xf32>
    %c0_3 = arith.constant 0 : index
    %c0_4 = arith.constant 0 : index
    %2 = vector.load %arg2[%c0_3, %c0_4] : memref<1x128xf32, #tpu.memory_space<vmem>>, vector<1x128xf32>
    %c0_5 = arith.constant 0 : index
    %c0_6 = arith.constant 0 : index
    %3 = vector.load %arg4[%c0_5, %c0_6] : memref<20x80xf32, #tpu.memory_space<vmem>>, vector<20x80xf32>
    %4 = vector.extract_strided_slice %2 {offsets = [0, 0], sizes = [1, 32], strides = [1, 1]} : vector<1x128xf32> to vector<1x32xf32>
    %5 = vector.extract_strided_slice %2 {offsets = [0, 32], sizes = [1, 20], strides = [1, 1]} : vector<1x128xf32> to vector<1x20xf32>
    %6 = vector.extract_strided_slice %2 {offsets = [0, 52], sizes = [1, 60], strides = [1, 1]} : vector<1x128xf32> to vector<1x60xf32>
    %7 = vector.extract_strided_slice %1 {offsets = [0, 0], sizes = [16, 640], strides = [1, 1]} : vector<16x672xf32> to vector<16x640xf32>
    %cst = arith.constant dense<0.000000e+00> : vector<20x640xf32>
    %8 = tpu.matmul %0, %7, %cst {dimension_numbers = #tpu.dot_dimension_numbers<[1], [0], [0], [1], [0, 0, 1, 1], [], []>} : vector<20x16xf32>, vector<16x640xf32>, vector<20x640xf32> -> vector<20x640xf32>
    %9 = vector.extract_strided_slice %1 {offsets = [0, 640], sizes = [16, 32], strides = [1, 1]} : vector<16x672xf32> to vector<16x32xf32>
    %cst_7 = arith.constant dense<0.000000e+00> : vector<20x32xf32>
    %10 = tpu.matmul %0, %9, %cst_7 {dimension_numbers = #tpu.dot_dimension_numbers<[1], [0], [0], [1], [0, 0, 1, 1], [], []>} : vector<20x16xf32>, vector<16x32xf32>, vector<20x32xf32> -> vector<20x32xf32>
    %11 = vector.broadcast %4 : vector<1x32xf32> to vector<20x32xf32>
    %12 = arith.addf %10, %11 : vector<20x32xf32>
    %13 = vector.extract_strided_slice %12 {offsets = [0, 0], sizes = [1, 32], strides = [1, 1]} : vector<20x32xf32> to vector<1x32xf32>
    %14 = vector.extract_strided_slice %12 {offsets = [1, 0], sizes = [1, 32], strides = [1, 1]} : vector<20x32xf32> to vector<1x32xf32>
    %15 = vector.extract_strided_slice %12 {offsets = [2, 0], sizes = [1, 32], strides = [1, 1]} : vector<20x32xf32> to vector<1x32xf32>
    %16 = vector.extract_strided_slice %12 {offsets = [3, 0], sizes = [1, 32], strides = [1, 1]} : vector<20x32xf32> to vector<1x32xf32>
    %17 = vector.extract_strided_slice %12 {offsets = [4, 0], sizes = [1, 32], strides = [1, 1]} : vector<20x32xf32> to vector<1x32xf32>
    %18 = vector.extract_strided_slice %12 {offsets = [5, 0], sizes = [1, 32], strides = [1, 1]} : vector<20x32xf32> to vector<1x32xf32>
    %19 = vector.extract_strided_slice %12 {offsets = [6, 0], sizes = [1, 32], strides = [1, 1]} : vector<20x32xf32> to vector<1x32xf32>
    %20 = vector.extract_strided_slice %12 {offsets = [7, 0], sizes = [1, 32], strides = [1, 1]} : vector<20x32xf32> to vector<1x32xf32>
    %21 = vector.extract_strided_slice %12 {offsets = [8, 0], sizes = [1, 32], strides = [1, 1]} : vector<20x32xf32> to vector<1x32xf32>
    %22 = vector.extract_strided_slice %12 {offsets = [9, 0], sizes = [1, 32], strides = [1, 1]} : vector<20x32xf32> to vector<1x32xf32>
    %23 = vector.extract_strided_slice %12 {offsets = [10, 0], sizes = [1, 32], strides = [1, 1]} : vector<20x32xf32> to vector<1x32xf32>
    %24 = vector.extract_strided_slice %12 {offsets = [11, 0], sizes = [1, 32], strides = [1, 1]} : vector<20x32xf32> to vector<1x32xf32>
    %25 = vector.extract_strided_slice %12 {offsets = [12, 0], sizes = [1, 32], strides = [1, 1]} : vector<20x32xf32> to vector<1x32xf32>
    %26 = vector.extract_strided_slice %12 {offsets = [13, 0], sizes = [1, 32], strides = [1, 1]} : vector<20x32xf32> to vector<1x32xf32>
    %27 = vector.extract_strided_slice %12 {offsets = [14, 0], sizes = [1, 32], strides = [1, 1]} : vector<20x32xf32> to vector<1x32xf32>
    %28 = vector.extract_strided_slice %12 {offsets = [15, 0], sizes = [1, 32], strides = [1, 1]} : vector<20x32xf32> to vector<1x32xf32>
    %29 = vector.extract_strided_slice %12 {offsets = [16, 0], sizes = [1, 32], strides = [1, 1]} : vector<20x32xf32> to vector<1x32xf32>
    %30 = vector.extract_strided_slice %12 {offsets = [17, 0], sizes = [1, 32], strides = [1, 1]} : vector<20x32xf32> to vector<1x32xf32>
    %31 = vector.extract_strided_slice %12 {offsets = [18, 0], sizes = [1, 32], strides = [1, 1]} : vector<20x32xf32> to vector<1x32xf32>
    %32 = vector.extract_strided_slice %12 {offsets = [19, 0], sizes = [1, 32], strides = [1, 1]} : vector<20x32xf32> to vector<1x32xf32>
    %33 = tpu.concatenate %13, %14, %15, %16, %17, %18, %19, %20, %21, %22, %23, %24, %25, %26, %27, %28 in 1 : vector<1x32xf32>, vector<1x32xf32>, vector<1x32xf32>, vector<1x32xf32>, vector<1x32xf32>, vector<1x32xf32>, vector<1x32xf32>, vector<1x32xf32>, vector<1x32xf32>, vector<1x32xf32>, vector<1x32xf32>, vector<1x32xf32>, vector<1x32xf32>, vector<1x32xf32>, vector<1x32xf32>, vector<1x32xf32> -> vector<1x512xf32>
    %34 = tpu.concatenate %29, %30, %31, %32 in 1 : vector<1x32xf32>, vector<1x32xf32>, vector<1x32xf32>, vector<1x32xf32> -> vector<1x128xf32>
    %35 = tpu.concatenate %33, %34 in 1 : vector<1x512xf32>, vector<1x128xf32> -> vector<1x640xf32>
    %36 = vector.broadcast %35 : vector<1x640xf32> to vector<20x640xf32>
    %37 = arith.addf %8, %36 : vector<20x640xf32>
    %cst_8 = arith.constant 0.000000e+00 : f32
    %38 = vector.broadcast %cst_8 : f32 to vector<20x640xf32>
    %39 = arith.maximumf %37, %38 : vector<20x640xf32>
    %c0_9 = arith.constant 0 : index
    %c0_10 = arith.constant 0 : index
    %40 = vector.load %arg3[%c0_9, %c0_10] : memref<640x20xf32, #tpu.memory_space<vmem>>, vector<640x20xf32>
    %cst_11 = arith.constant dense<0.000000e+00> : vector<20x20xf32>
    %41 = tpu.matmul %39, %40, %cst_11 {dimension_numbers = #tpu.dot_dimension_numbers<[1], [0], [0], [1], [0, 0, 1, 1], [], []>} : vector<20x640xf32>, vector<640x20xf32>, vector<20x20xf32> -> vector<20x20xf32>
    %42 = vector.extract_strided_slice %3 {offsets = [0, 0], sizes = [20, 20], strides = [1, 1]} : vector<20x80xf32> to vector<20x20xf32>
    %cst_12 = arith.constant dense<0.000000e+00> : vector<20x20xf32>
    %43 = tpu.matmul %41, %42, %cst_12 {dimension_numbers = #tpu.dot_dimension_numbers<[1], [0], [0], [1], [0, 0, 1, 1], [], []>} : vector<20x20xf32>, vector<20x20xf32>, vector<20x20xf32> -> vector<20x20xf32>
    %44 = vector.broadcast %5 : vector<1x20xf32> to vector<20x20xf32>
    %45 = arith.addf %43, %44 : vector<20x20xf32>
    %cst_13 = arith.constant 0.000000e+00 : f32
    %46 = vector.broadcast %cst_13 : f32 to vector<20x20xf32>
    %47 = arith.maximumf %45, %46 : vector<20x20xf32>
    %48 = vector.extract_strided_slice %3 {offsets = [0, 20], sizes = [20, 60], strides = [1, 1]} : vector<20x80xf32> to vector<20x60xf32>
    %cst_14 = arith.constant dense<0.000000e+00> : vector<20x60xf32>
    %49 = tpu.matmul %47, %48, %cst_14 {dimension_numbers = #tpu.dot_dimension_numbers<[1], [0], [0], [1], [0, 0, 1, 1], [], []>} : vector<20x20xf32>, vector<20x60xf32>, vector<20x60xf32> -> vector<20x60xf32>
    %50 = vector.broadcast %6 : vector<1x60xf32> to vector<20x60xf32>
    %51 = arith.addf %49, %50 : vector<20x60xf32>
    %52 = vector.extract_strided_slice %51 {offsets = [0, 0], sizes = [20, 20], strides = [1, 1]} : vector<20x60xf32> to vector<20x20xf32>
    %53 = vector.extract_strided_slice %51 {offsets = [0, 20], sizes = [20, 20], strides = [1, 1]} : vector<20x60xf32> to vector<20x20xf32>
    %54 = vector.extract_strided_slice %51 {offsets = [0, 40], sizes = [20, 20], strides = [1, 1]} : vector<20x60xf32> to vector<20x20xf32>
    %55 = arith.maximumf %52, %53 : vector<20x20xf32>
    %56 = arith.maximumf %55, %54 : vector<20x20xf32>
    %57 = tpu.concatenate %56, %56, %56 in 1 : vector<20x20xf32>, vector<20x20xf32>, vector<20x20xf32> -> vector<20x60xf32>
    %58 = arith.subf %51, %57 : vector<20x60xf32>
    %59 = math.exp %58 : vector<20x60xf32>
    %60 = vector.extract_strided_slice %59 {offsets = [0, 0], sizes = [20, 20], strides = [1, 1]} : vector<20x60xf32> to vector<20x20xf32>
    %61 = vector.extract_strided_slice %59 {offsets = [0, 20], sizes = [20, 20], strides = [1, 1]} : vector<20x60xf32> to vector<20x20xf32>
    %62 = arith.addf %60, %61 : vector<20x20xf32>
    %63 = vector.extract_strided_slice %59 {offsets = [0, 40], sizes = [20, 20], strides = [1, 1]} : vector<20x60xf32> to vector<20x20xf32>
    %64 = arith.addf %62, %63 : vector<20x20xf32>
    %65 = tpu.reciprocal %64 : vector<20x20xf32> -> vector<20x20xf32>
    %66 = tpu.concatenate %65, %65, %65 in 1 : vector<20x20xf32>, vector<20x20xf32>, vector<20x20xf32> -> vector<20x60xf32>
    %67 = arith.mulf %59, %66 : vector<20x60xf32>
    %c0_15 = arith.constant 0 : index
    %c0_16 = arith.constant 0 : index
    %68 = vector.load %arg5[%c0_15, %c0_16] : memref<60x60xf32, #tpu.memory_space<vmem>>, vector<60x60xf32>
    %cst_17 = arith.constant dense<0.000000e+00> : vector<20x60xf32>
    %69 = tpu.matmul %67, %68, %cst_17 {dimension_numbers = #tpu.dot_dimension_numbers<[1], [0], [0], [1], [0, 0, 1, 1], [], []>} : vector<20x60xf32>, vector<60x60xf32>, vector<20x60xf32> -> vector<20x60xf32>
    %c0_18 = arith.constant 0 : index
    %c0_19 = arith.constant 0 : index
    %70 = vector.load %arg6[%c0_18, %c0_19] : memref<20x60xf32, #tpu.memory_space<vmem>>, vector<20x60xf32>
    tpu.vector_store %arg6[%c0_18, %c0_19], %69 {strides = array<i32>} : memref<20x60xf32, #tpu.memory_space<vmem>>, vector<20x60xf32>,
    return
  }
}

</mosaic_0001>

<llo_original>
// kernel: edge_classifier_forward.1
$region0: #{edge_classifier_forward.1}
  #allocation0 [shape = 'u32[]', space=smem, size = 0x4, offset = 0x4, fixed_abs, tag = 'smem constant byte address 0x4 - core index']
  #allocation1 [shape = 'u32[144,128]{1,0:T(1,128)}', space=vmem, size = 0x12000, scoped, tag = 'internal scratch']
  %s0 = inlined_call_operand.vmem [shape: f32[20,16], index: 0, kind: input, shape index: {}]
  %s1 = inlined_call_operand.vmem [shape: f32[16,672], index: 1, kind: input, shape index: {}]
  %s2 = inlined_call_operand.vmem [shape: f32[1,128], index: 2, kind: input, shape index: {}]
  %s3 = inlined_call_operand.vmem [shape: f32[640,20], index: 3, kind: input, shape index: {}]
  %s4 = inlined_call_operand.vmem [shape: f32[20,80], index: 4, kind: input, shape index: {}]
  %s5 = inlined_call_operand.vmem [shape: f32[60,60], index: 5, kind: input, shape index: {}]
  %s6 = inlined_call_operand.vmem [shape: f32[20,60], index: 6, kind: output, shape index: {}]
  %s7 = sld [smem:[#allocation0]]
  $region34: #{edge_classifier_forward.1} parent=0
    _
  %s9 = ssub.s32 1, %s7
  %s10 = scalar_select 0, %s9, %s7
  // Predicated region
  $region2: #{edge_classifier_forward.1} parent=0 // pred_check
    _
  $region3: #{edge_classifier_forward.1} parent=0 // pred_check_branch
    %12 = sbr.rel (0) target = $region5
  $region4: #{edge_classifier_forward.1} parent=0 // pred_region
    _
  $region5: #{edge_classifier_forward.1} parent=0 // pred_fallthru
    _
  // Predicated region
  $region6: #{edge_classifier_forward.1} parent=0 // pred_check
    _
  $region7: #{edge_classifier_forward.1} parent=0 // pred_check_branch
    %14 = sbr.rel (0) target = $region9
  $region8: #{edge_classifier_forward.1} parent=0 // pred_region
    _
  $region9: #{edge_classifier_forward.1} parent=0 // pred_fallthru
    _
  // Predicated region
  $region10: #{edge_classifier_forward.1} parent=0 // pred_check
    _
  $region11: #{edge_classifier_forward.1} parent=0 // pred_check_branch
    %16 = sbr.rel (0) target = $region13
  $region12: #{edge_classifier_forward.1} parent=0 // pred_region
    _
  $region13: #{edge_classifier_forward.1} parent=0 // pred_fallthru
    _
  // Predicated region
  $region14: #{edge_classifier_forward.1} parent=0 // pred_check
    _
  $region15: #{edge_classifier_forward.1} parent=0 // pred_check_branch
    %18 = sbr.rel (0) target = $region17
  $region16: #{edge_classifier_forward.1} parent=0 // pred_region
    _
  $region17: #{edge_classifier_forward.1} parent=0 // pred_fallthru
    _
  // Predicated region
  $region18: #{edge_classifier_forward.1} parent=0 // pred_check
    _
  $region19: #{edge_classifier_forward.1} parent=0 // pred_check_branch
    %20 = sbr.rel (0) target = $region21
  $region20: #{edge_classifier_forward.1} parent=0 // pred_region
    _
  $region21: #{edge_classifier_forward.1} parent=0 // pred_fallthru
    _
  // Predicated region
  $region22: #{edge_classifier_forward.1} parent=0 // pred_check
    _
  $region23: #{edge_classifier_forward.1} parent=0 // pred_check_branch
    %22 = sbr.rel (0) target = $region25
  $region24: #{edge_classifier_forward.1} parent=0 // pred_region
    _
  $region25: #{edge_classifier_forward.1} parent=0 // pred_fallthru
    _
  %v23 = vld [vmem:[%s0] sm:$0xff]
  %v24 = vld [vmem:[%s0 + $0x8] sm:$0xff]
  %v25 = vld [vmem:[%s0 + $0x10] sm:$0xf]
  %v26 = vld [vmem:[%s1] sm:$0xff]
  %v27 = vld [vmem:[%s1 + $0x8] sm:$0xff]
  %v28 = vld [vmem:[%s1 + $0x10] sm:$0xff]
  %v29 = vld [vmem:[%s1 + $0x18] sm:$0xff]
  %v30 = vld [vmem:[%s1 + $0x20] sm:$0xff]
  %v31 = vld [vmem:[%s1 + $0x28] sm:$0xff]
  %v32 = vld [vmem:[%s1 + $0x30] sm:$0xff]
  %v33 = vld [vmem:[%s1 + $0x38] sm:$0xff]
  %v34 = vld [vmem:[%s1 + $0x40] sm:$0xff]
  %v35 = vld [vmem:[%s1 + $0x48] sm:$0xff]
  %v36 = vld [vmem:[%s1 + $0x50] sm:$0xff]
  %v37 = vld [vmem:[%s1 + $0x58] sm:$0xff]
  %v38 = vld [vmem:[%s2] sm:$0x1]
  %v39 = vld [vmem:[%s4] sm:$0xff]
  %v40 = vld [vmem:[%s4 + $0x8] sm:$0xff]
  %v41 = vld [vmem:[%s4 + $0x10] sm:$0xf]
  %v43 = vlaneseq
  %v44 = vshrl.u32 %v43, 7
  %v45 = vsub.s32 0, %v44
  %v46 = vrot.slane %v38, %v45
  %vm48 = vcmask 130048
  %v50 = vsel %vm48, %v23, 0
  %v53 = vsel %vm48, %v24, 0
  %v56 = vsel %vm48, %v25, 0
  %58 = vmatprep.subr.mxu0 0.0
  %59 = vmatpush1.msra.mxu0 %v31
  %60 = vmatprep.subr.mxu0 0.0
  %61 = vmatpush1.msra.mxu0 %v37
  %62 = vmatprep.subr.mxu0 0.0
  %63 = vmatpush1.msra.mxu0 0.0
  %64 = vmatprep.subr.mxu0 0.0
  %65 = vmatpush1.msra.mxu0 0.0
  %66 = vmatprep.subr.mxu0 0.0
  %67 = vmatpush1.msra.mxu0 0.0
  %68 = vmatprep.subr.mxu0 0.0
  %69 = vmatpush1.msra.mxu0 0.0
  %70 = vmatprep.subr.mxu0 0.0
  %71 = vmatpush1.msra.mxu0 0.0
  %72 = vmatprep.subr.mxu0 0.0
  %73 = vmatpush1.msra.mxu0 0.0
  %74 = vmatprep.subr.mxu0 0.0
  %75 = vmatpush1.msra.mxu0 0.0
  %76 = vmatprep.subr.mxu0 0.0
  %77 = vmatpush1.msra.mxu0 0.0
  %78 = vmatprep.subr.mxu0 0.0
  %79 = vmatpush1.msra.mxu0 0.0
  %80 = vmatprep.subr.mxu0 0.0
  %81 = vmatpush1.msra.mxu0 0.0
  %82 = vmatprep.subr.mxu0 0.0
  %83 = vmatpush1.msra.mxu0 0.0
  %84 = vmatprep.subr.mxu0 0.0
  %85 = vmatpush1.msra.mxu0 0.0
  %86 = vmatprep.subr.mxu0 0.0
  %87 = vmatpush1.msra.mxu0 0.0
  %88 = vmatprep.subr.mxu0 0.0
  %89 = vmatpush1.msra.mxu0 0.0
  %90 = vmatprep.subr.mxu0 0.0
  %91 = vmatpush1.msra.mxu0 0.0
  %92 = vmatprep.subr.mxu0 0.0
  %93 = vmatpush1.msra.mxu0 0.0
  %94 = vmatprep.subr.mxu0 0.0
  %95 = vmatpush1.msra.mxu0 0.0
  %96 = vmatprep.subr.mxu0 0.0
  %97 = vmatpush1.msra.mxu0 0.0
  %98 = vmatprep.subr.mxu0 0.0
  %99 = vmatpush1.msra.mxu0 0.0
  %100 = vmatprep.subr.mxu0 0.0
  %101 = vmatpush1.msra.mxu0 0.0
  %102 = vmatprep.subr.mxu0 0.0
  %103 = vmatpush1.msra.mxu0 0.0
  %104 = vmatprep.subr.mxu0 0.0
  %105 = vmatpush1.msra.mxu0 0.0
  %106 = vmatprep.subr.mxu0 0.0
  %107 = vmatpush1.msra.mxu0 0.0
  %108 = vmatprep.subr.mxu0 0.0
  %109 = vmatpush1.msra.mxu0 0.0
  %110 = vmatprep.subr.mxu0 0.0
  %111 = vmatpush1.msra.mxu0 0.0
  %112 = vmatprep.subr.mxu0 0.0
  %113 = vmatpush1.msra.mxu0 0.0
  %114 = vmatprep.subr.mxu0 0.0
  %115 = vmatpush1.msra.mxu0 0.0
  %116 = vmatprep.subr.mxu0 0.0
  %117 = vmatpush1.msra.mxu0 0.0
  %118 = vmatprep.subr.mxu0 0.0
  %119 = vmatpush1.msra.mxu0 0.0
  %120 = vmatprep.subr.mxu0 0.0
  %121 = vmatpush1.msra.mxu0 0.0
  %122 = vmatprep.mubr.f32.mxu0 0.0
  %123 = vmatmul.mubr.f32.gmra.mrb[0].mxu0 %v50
  %v124 = vpop.f32.mrb[0].mxu0
  %v125 = vadd.f32 %v46, %v124
  %v126 = vpop.f32.mrb[0].mxu0
  %127 = vmatprep.mubr.f32.mxu0 0.0
  %128 = vmatmul.mubr.f32.gmra.mrb[0].mxu0 %v53
  %v129 = vpop.f32.mrb[0].mxu0
  %v130 = vadd.f32 %v46, %v129
  %v131 = vpop.f32.mrb[0].mxu0
  %132 = vmatprep.mubr.f32.mxu0 0.0
  %133 = vmatmul.mubr.f32.gmra.mrb[0].mxu0 %v56
  %v134 = vpop.f32.mrb[0].mxu0
  %v135 = vadd.f32 %v46, %v134
  %v136 = vpop.f32.mrb[0].mxu0
  %137 = vdwg.mxu0
  %v139 = vrot.slane %v125, 1
  %140 = vrot.lane.b32.xlu0 %v139, 32
  %v141 = vpop.permute.xlu0 %140
  %v143 = vrot.slane %v125, 2
  %144 = vrot.lane.b32.xlu0 %v143, 64
  %v145 = vpop.permute.xlu0 %144
  %v147 = vrot.slane %v125, 3
  %148 = vrot.lane.b32.xlu0 %v147, 96
  %v149 = vpop.permute.xlu0 %148
  %v151 = vrot.slane %v125, 4
  %v153 = vrot.slane %v125, 5
  %154 = vrot.lane.b32.xlu0 %v153, 32
  %v155 = vpop.permute.xlu0 %154
  %v157 = vrot.slane %v125, 6
  %158 = vrot.lane.b32.xlu0 %v157, 64
  %v159 = vpop.permute.xlu0 %158
  %v161 = vrot.slane %v125, 7
  %162 = vrot.lane.b32.xlu0 %v161, 96
  %v163 = vpop.permute.xlu0 %162
  %v166 = vrot.slane %v130, 1
  %167 = vrot.lane.b32.xlu0 %v166, 32
  %v168 = vpop.permute.xlu0 %167
  %v170 = vrot.slane %v130, 2
  %171 = vrot.lane.b32.xlu0 %v170, 64
  %v172 = vpop.permute.xlu0 %171
  %v174 = vrot.slane %v130, 3
  %175 = vrot.lane.b32.xlu0 %v174, 96
  %v176 = vpop.permute.xlu0 %175
  %v178 = vrot.slane %v130, 4
  %v180 = vrot.slane %v130, 5
  %181 = vrot.lane.b32.xlu0 %v180, 32
  %v182 = vpop.permute.xlu0 %181
  %v184 = vrot.slane %v130, 6
  %185 = vrot.lane.b32.xlu0 %v184, 64
  %v186 = vpop.permute.xlu0 %185
  %v188 = vrot.slane %v130, 7
  %189 = vrot.lane.b32.xlu0 %v188, 96
  %v190 = vpop.permute.xlu0 %189
  %vm192 = vcmask 261120
  %v193 = vsel %vm192, %v125, %v141
  %vm194 = vcmask 523264
  %v195 = vsel %vm194, %v193, %v145
  %vm196 = vcmask 785408
  %v197 = vsel %vm196, %v195, %v149
  %v198 = vsel %vm192, %v151, %v155
  %v199 = vsel %vm194, %v198, %v159
  %v200 = vsel %vm196, %v199, %v163
  %v201 = vsel %vm192, %v130, %v168
  %v202 = vsel %vm194, %v201, %v172
  %v203 = vsel %vm196, %v202, %v176
  %v204 = vsel %vm192, %v178, %v182
  %v205 = vsel %vm194, %v204, %v186
  %v206 = vsel %vm196, %v205, %v190
  %v208 = vrot.slane %v135, 1
  %209 = vrot.lane.b32.xlu0 %v208, 32
  %v210 = vpop.permute.xlu0 %209
  %v212 = vrot.slane %v135, 2
  %213 = vrot.lane.b32.xlu0 %v212, 64
  %v214 = vpop.permute.xlu0 %213
  %v216 = vrot.slane %v135, 3
  %217 = vrot.lane.b32.xlu0 %v216, 96
  %v218 = vpop.permute.xlu0 %217
  %v220 = vsel %vm192, %v135, %v210
  %v221 = vsel %vm194, %v220, %v214
  %v222 = vsel %vm196, %v221, %v218
  %v223 = vlaneseq
  %v224 = vshrl.u32 %v223, 7
  %v225 = vsub.s32 0, %v224
  %v226 = vrot.slane %v197, %v225
  %v227 = vlaneseq
  %v228 = vshrl.u32 %v227, 7
  %v229 = vsub.s32 0, %v228
  %v230 = vrot.slane %v200, %v229
  %v231 = vlaneseq
  %v232 = vshrl.u32 %v231, 7
  %v233 = vsub.s32 0, %v232
  %v234 = vrot.slane %v203, %v233
  %v235 = vlaneseq
  %v236 = vshrl.u32 %v235, 7
  %v237 = vsub.s32 0, %v236
  %v238 = vrot.slane %v206, %v237
  %v239 = vlaneseq
  %v240 = vshrl.u32 %v239, 7
  %v241 = vsub.s32 0, %v240
  %v242 = vrot.slane %v222, %v241
  %243 = vmatprep.subr.mxu0 %v27
  %244 = vmatpush1.msra.mxu0 %v26
  %245 = vmatprep.subr.mxu0 %v33
  %246 = vmatpush1.msra.mxu0 %v32
  %247 = vmatprep.subr.mxu0 0.0
  %248 = vmatpush1.msra.mxu0 0.0
  %249 = vmatprep.subr.mxu0 0.0
  %250 = vmatpush1.msra.mxu0 0.0
  %251 = vmatprep.subr.mxu0 0.0
  %252 = vmatpush1.msra.mxu0 0.0
  %253 = vmatprep.subr.mxu0 0.0
  %254 = vmatpush1.msra.mxu0 0.0
  %255 = vmatprep.subr.mxu0 0.0
  %256 = vmatpush1.msra.mxu0 0.0
  %257 = vmatprep.subr.mxu0 0.0
  %258 = vmatpush1.msra.mxu0 0.0
  %259 = vmatprep.subr.mxu0 0.0
  %260 = vmatpush1.msra.mxu0 0.0
  %261 = vmatprep.subr.mxu0 0.0
  %262 = vmatpush1.msra.mxu0 0.0
  %263 = vmatprep.subr.mxu0 0.0
  %264 = vmatpush1.msra.mxu0 0.0
  %265 = vmatprep.subr.mxu0 0.0
  %266 = vmatpush1.msra.mxu0 0.0
  %267 = vmatprep.subr.mxu0 0.0
  %268 = vmatpush1.msra.mxu0 0.0
  %269 = vmatprep.subr.mxu0 0.0
  %270 = vmatpush1.msra.mxu0 0.0
  %271 = vmatprep.subr.mxu0 0.0
  %272 = vmatpush1.msra.mxu0 0.0
  %273 = vmatprep.subr.mxu0 0.0
  %274 = vmatpush1.msra.mxu0 0.0
  %275 = vmatprep.subr.mxu0 0.0
  %276 = vmatpush1.msra.mxu0 0.0
  %277 = vmatprep.subr.mxu0 0.0
  %278 = vmatpush1.msra.mxu0 0.0
  %279 = vmatprep.subr.mxu0 0.0
  %280 = vmatpush1.msra.mxu0 0.0
  %281 = vmatprep.subr.mxu0 0.0
  %282 = vmatpush1.msra.mxu0 0.0
  %283 = vmatprep.subr.mxu0 0.0
  %284 = vmatpush1.msra.mxu0 0.0
  %285 = vmatprep.subr.mxu0 0.0
  %286 = vmatpush1.msra.mxu0 0.0
  %287 = vmatprep.subr.mxu0 0.0
  %288 = vmatpush1.msra.mxu0 0.0
  %289 = vmatprep.subr.mxu0 0.0
  %290 = vmatpush1.msra.mxu0 0.0
  %291 = vmatprep.subr.mxu0 0.0
  %292 = vmatpush1.msra.mxu0 0.0
  %293 = vmatprep.subr.mxu0 0.0
  %294 = vmatpush1.msra.mxu0 0.0
  %295 = vmatprep.subr.mxu0 0.0
  %296 = vmatpush1.msra.mxu0 0.0
  %297 = vmatprep.subr.mxu0 0.0
  %298 = vmatpush1.msra.mxu0 0.0
  %299 = vmatprep.subr.mxu0 0.0
  %300 = vmatpush1.msra.mxu0 0.0
  %301 = vmatprep.subr.mxu0 0.0
  %302 = vmatpush1.msra.mxu0 0.0
  %303 = vmatprep.subr.mxu0 0.0
  %304 = vmatpush1.msra.mxu0 0.0
  %305 = vmatprep.subr.mxu0 0.0
  %306 = vmatpush1.msra.mxu0 0.0
  %307 = vmatprep.mubr.f32.mxu0 0.0
  %308 = vmatmul.mubr.f32.gmra.mrb[0].mxu0 %v50
  %v309 = vpop.f32.mrb[0].mxu0
  %v310 = vadd.f32 %v226, %v309
  %v311 = vpop.f32.mrb[0].mxu0
  %v312 = vadd.f32 %v230, %v311
  %313 = vmatprep.mubr.f32.mxu0 0.0
  %314 = vmatmul.mubr.f32.gmra.mrb[0].mxu0 %v53
  %v315 = vpop.f32.mrb[0].mxu0
  %v316 = vadd.f32 %v226, %v315
  %v317 = vpop.f32.mrb[0].mxu0
  %v318 = vadd.f32 %v230, %v317
  %319 = vmatprep.mubr.f32.mxu0 0.0
  %320 = vmatmul.mubr.f32.gmra.mrb[0].mxu0 %v56
  %v321 = vpop.f32.mrb[0].mxu0
  %v322 = vadd.f32 %v226, %v321
  %v323 = vpop.f32.mrb[0].mxu0
  %v324 = vadd.f32 %v230, %v323
  %325 = vdwg.mxu0
  %326 = vmatprep.subr.mxu0 %v29
  %327 = vmatpush1.msra.mxu0 %v28
  %328 = vmatprep.subr.mxu0 %v35
  %329 = vmatpush1.msra.mxu0 %v34
  %330 = vmatprep.subr.mxu0 0.0
  %331 = vmatpush1.msra.mxu0 0.0
  %332 = vmatprep.subr.mxu0 0.0
  %333 = vmatpush1.msra.mxu0 0.0
  %334 = vmatprep.subr.mxu0 0.0
  %335 = vmatpush1.msra.mxu0 0.0
  %336 = vmatprep.subr.mxu0 0.0
  %337 = vmatpush1.msra.mxu0 0.0
  %338 = vmatprep.subr.mxu0 0.0
  %339 = vmatpush1.msra.mxu0 0.0
  %340 = vmatprep.subr.mxu0 0.0
  %341 = vmatpush1.msra.mxu0 0.0
  %342 = vmatprep.subr.mxu0 0.0
  %343 = vmatpush1.msra.mxu0 0.0
  %344 = vmatprep.subr.mxu0 0.0
  %345 = vmatpush1.msra.mxu0 0.0
  %346 = vmatprep.subr.mxu0 0.0
  %347 = vmatpush1.msra.mxu0 0.0
  %348 = vmatprep.subr.mxu0 0.0
  %349 = vmatpush1.msra.mxu0 0.0
  %350 = vmatprep.subr.mxu0 0.0
  %351 = vmatpush1.msra.mxu0 0.0
  %352 = vmatprep.subr.mxu0 0.0
  %353 = vmatpush1.msra.mxu0 0.0
  %354 = vmatprep.subr.mxu0 0.0
  %355 = vmatpush1.msra.mxu0 0.0
  %356 = vmatprep.subr.mxu0 0.0
  %357 = vmatpush1.msra.mxu0 0.0
  %358 = vmatprep.subr.mxu0 0.0
  %359 = vmatpush1.msra.mxu0 0.0
  %360 = vmatprep.subr.mxu0 0.0
  %361 = vmatpush1.msra.mxu0 0.0
  %362 = vmatprep.subr.mxu0 0.0
  %363 = vmatpush1.msra.mxu0 0.0
  %364 = vmatprep.subr.mxu0 0.0
  %365 = vmatpush1.msra.mxu0 0.0
  %366 = vmatprep.subr.mxu0 0.0
  %367 = vmatpush1.msra.mxu0 0.0
  %368 = vmatprep.subr.mxu0 0.0
  %369 = vmatpush1.msra.mxu0 0.0
  %370 = vmatprep.subr.mxu0 0.0
  %371 = vmatpush1.msra.mxu0 0.0
  %372 = vmatprep.subr.mxu0 0.0
  %373 = vmatpush1.msra.mxu0 0.0
  %374 = vmatprep.subr.mxu0 0.0
  %375 = vmatpush1.msra.mxu0 0.0
  %376 = vmatprep.subr.mxu0 0.0
  %377 = vmatpush1.msra.mxu0 0.0
  %378 = vmatprep.subr.mxu0 0.0
  %379 = vmatpush1.msra.mxu0 0.0
  %380 = vmatprep.subr.mxu0 0.0
  %381 = vmatpush1.msra.mxu0 0.0
  %382 = vmatprep.subr.mxu0 0.0
  %383 = vmatpush1.msra.mxu0 0.0
  %384 = vmatprep.subr.mxu0 0.0
  %385 = vmatpush1.msra.mxu0 0.0
  %386 = vmatprep.subr.mxu0 0.0
  %387 = vmatpush1.msra.mxu0 0.0
  %388 = vmatprep.subr.mxu0 0.0
  %389 = vmatpush1.msra.mxu0 0.0
  %390 = vmatprep.mubr.f32.mxu0 0.0
  %391 = vmatmul.mubr.f32.gmra.mrb[0].mxu0 %v50
  %v392 = vpop.f32.mrb[0].mxu0
  %v393 = vadd.f32 %v234, %v392
  %v394 = vpop.f32.mrb[0].mxu0
  %v395 = vadd.f32 %v238, %v394
  %396 = vmatprep.mubr.f32.mxu0 0.0
  %397 = vmatmul.mubr.f32.gmra.mrb[0].mxu0 %v53
  %v398 = vpop.f32.mrb[0].mxu0
  %v399 = vadd.f32 %v234, %v398
  %v400 = vpop.f32.mrb[0].mxu0
  %v401 = vadd.f32 %v238, %v400
  %402 = vmatprep.mubr.f32.mxu0 0.0
  %403 = vmatmul.mubr.f32.gmra.mrb[0].mxu0 %v56
  %v404 = vpop.f32.mrb[0].mxu0
  %v405 = vadd.f32 %v234, %v404
  %v406 = vpop.f32.mrb[0].mxu0
  %v407 = vadd.f32 %v238, %v406
  %408 = vdwg.mxu0
  %409 = vmatprep.subr.mxu0 0.0
  %410 = vmatpush1.msra.mxu0 %v30
  %411 = vmatprep.subr.mxu0 0.0
  %412 = vmatpush1.msra.mxu0 %v36
  %413 = vmatprep.subr.mxu0 0.0
  %414 = vmatpush1.msra.mxu0 0.0
  %415 = vmatprep.subr.mxu0 0.0
  %416 = vmatpush1.msra.mxu0 0.0
  %417 = vmatprep.subr.mxu0 0.0
  %418 = vmatpush1.msra.mxu0 0.0
  %419 = vmatprep.subr.mxu0 0.0
  %420 = vmatpush1.msra.mxu0 0.0
  %421 = vmatprep.subr.mxu0 0.0
  %422 = vmatpush1.msra.mxu0 0.0
  %423 = vmatprep.subr.mxu0 0.0
  %424 = vmatpush1.msra.mxu0 0.0
  %425 = vmatprep.subr.mxu0 0.0
  %426 = vmatpush1.msra.mxu0 0.0
  %427 = vmatprep.subr.mxu0 0.0
  %428 = vmatpush1.msra.mxu0 0.0
  %429 = vmatprep.subr.mxu0 0.0
  %430 = vmatpush1.msra.mxu0 0.0
  %431 = vmatprep.subr.mxu0 0.0
  %432 = vmatpush1.msra.mxu0 0.0
  %433 = vmatprep.subr.mxu0 0.0
  %434 = vmatpush1.msra.mxu0 0.0
  %435 = vmatprep.subr.mxu0 0.0
  %436 = vmatpush1.msra.mxu0 0.0
  %437 = vmatprep.subr.mxu0 0.0
  %438 = vmatpush1.msra.mxu0 0.0
  %439 = vmatprep.subr.mxu0 0.0
  %440 = vmatpush1.msra.mxu0 0.0
  %441 = vmatprep.subr.mxu0 0.0
  %442 = vmatpush1.msra.mxu0 0.0
  %443 = vmatprep.subr.mxu0 0.0
  %444 = vmatpush1.msra.mxu0 0.0
  %445 = vmatprep.subr.mxu0 0.0
  %446 = vmatpush1.msra.mxu0 0.0
  %447 = vmatprep.subr.mxu0 0.0
  %448 = vmatpush1.msra.mxu0 0.0
  %449 = vmatprep.subr.mxu0 0.0
  %450 = vmatpush1.msra.mxu0 0.0
  %451 = vmatprep.subr.mxu0 0.0
  %452 = vmatpush1.msra.mxu0 0.0
  %453 = vmatprep.subr.mxu0 0.0
  %454 = vmatpush1.msra.mxu0 0.0
  %455 = vmatprep.subr.mxu0 0.0
  %456 = vmatpush1.msra.mxu0 0.0
  %457 = vmatprep.subr.mxu0 0.0
  %458 = vmatpush1.msra.mxu0 0.0
  %459 = vmatprep.subr.mxu0 0.0
  %460 = vmatpush1.msra.mxu0 0.0
  %461 = vmatprep.subr.mxu0 0.0
  %462 = vmatpush1.msra.mxu0 0.0
  %463 = vmatprep.subr.mxu0 0.0
  %464 = vmatpush1.msra.mxu0 0.0
  %465 = vmatprep.subr.mxu0 0.0
  %466 = vmatpush1.msra.mxu0 0.0
  %467 = vmatprep.subr.mxu0 0.0
  %468 = vmatpush1.msra.mxu0 0.0
  %469 = vmatprep.subr.mxu0 0.0
  %470 = vmatpush1.msra.mxu0 0.0
  %471 = vmatprep.subr.mxu0 0.0
  %472 = vmatpush1.msra.mxu0 0.0
  %473 = vmatprep.mubr.f32.mxu0 0.0
  %474 = vmatmul.mubr.f32.gmra.mrb[0].mxu0 %v50
  %v475 = vpop.f32.mrb[0].mxu0
  %v476 = vadd.f32 %v242, %v475
  %v477 = vpop.f32.mrb[0].mxu0
  %478 = vmatprep.mubr.f32.mxu0 0.0
  %479 = vmatmul.mubr.f32.gmra.mrb[0].mxu0 %v53
  %v480 = vpop.f32.mrb[0].mxu0
  %v481 = vadd.f32 %v242, %v480
  %v482 = vpop.f32.mrb[0].mxu0
  %483 = vmatprep.mubr.f32.mxu0 0.0
  %484 = vmatmul.mubr.f32.gmra.mrb[0].mxu0 %v56
  %v485 = vpop.f32.mrb[0].mxu0
  %v486 = vadd.f32 %v242, %v485
  %v487 = vpop.f32.mrb[0].mxu0
  %488 = vdwg.mxu0
  %v489 = vmax.f32 %v310, 0.0
  %v490 = vmax.f32 %v312, 0.0
  %v491 = vmax.f32 %v393, 0.0
  %v492 = vmax.f32 %v395, 0.0
  %v493 = vmax.f32 %v476, 0.0
  %v494 = vmax.f32 %v316, 0.0
  %v495 = vmax.f32 %v318, 0.0
  %v496 = vmax.f32 %v399, 0.0
  %v497 = vmax.f32 %v401, 0.0
  %v498 = vmax.f32 %v481, 0.0
  %v499 = vmax.f32 %v322, 0.0
  %v500 = vmax.f32 %v324, 0.0
  %v501 = vmax.f32 %v405, 0.0
  %v502 = vmax.f32 %v407, 0.0
  %v503 = vmax.f32 %v486, 0.0
  %v504 = vld [vmem:[%s3] sm:$0xff]
  %v505 = vld [vmem:[%s3 + $0x8] sm:$0xff]
  %v506 = vld [vmem:[%s3 + $0x10] sm:$0xff]
  %v507 = vld [vmem:[%s3 + $0x18] sm:$0xff]
  %v508 = vld [vmem:[%s3 + $0x20] sm:$0xff]
  %v509 = vld [vmem:[%s3 + $0x28] sm:$0xff]
  %v510 = vld [vmem:[%s3 + $0x30] sm:$0xff]
  %v511 = vld [vmem:[%s3 + $0x38] sm:$0xff]
  %v512 = vld [vmem:[%s3 + $0x40] sm:$0xff]
  %v513 = vld [vmem:[%s3 + $0x48] sm:$0xff]
  %v514 = vld [vmem:[%s3 + $0x50] sm:$0xff]
  %v515 = vld [vmem:[%s3 + $0x58] sm:$0xff]
  %v516 = vld [vmem:[%s3 + $0x60] sm:$0xff]
  %v517 = vld [vmem:[%s3 + $0x68] sm:$0xff]
  %v518 = vld [vmem:[%s3 + $0x70] sm:$0xff]
  %v519 = vld [vmem:[%s3 + $0x78] sm:$0xff]
  %v520 = vld [vmem:[%s3 + $0x80] sm:$0xff]
  %v521 = vld [vmem:[%s3 + $0x88] sm:$0xff]
  %v522 = vld [vmem:[%s3 + $0x90] sm:$0xff]
  %v523 = vld [vmem:[%s3 + $0x98] sm:$0xff]
  %v524 = vld [vmem:[%s3 + $0xa0] sm:$0xff]
  %v525 = vld [vmem:[%s3 + $0xa8] sm:$0xff]
  %v526 = vld [vmem:[%s3 + $0xb0] sm:$0xff]
  %v527 = vld [vmem:[%s3 + $0xb8] sm:$0xff]
  %v528 = vld [vmem:[%s3 + $0xc0] sm:$0xff]
  %v529 = vld [vmem:[%s3 + $0xc8] sm:$0xff]
  %v530 = vld [vmem:[%s3 + $0xd0] sm:$0xff]
  %v531 = vld [vmem:[%s3 + $0xd8] sm:$0xff]
  %v532 = vld [vmem:[%s3 + $0xe0] sm:$0xff]
  %v533 = vld [vmem:[%s3 + $0xe8] sm:$0xff]
  %v534 = vld [vmem:[%s3 + $0xf0] sm:$0xff]
  %v535 = vld [vmem:[%s3 + $0xf8] sm:$0xff]
  %v536 = vld [vmem:[%s3 + $0x100] sm:$0xff]
  %v537 = vld [vmem:[%s3 + $0x108] sm:$0xff]
  %v538 = vld [vmem:[%s3 + $0x110] sm:$0xff]
  %v539 = vld [vmem:[%s3 + $0x118] sm:$0xff]
  %v540 = vld [vmem:[%s3 + $0x120] sm:$0xff]
  %v541 = vld [vmem:[%s3 + $0x128] sm:$0xff]
  %v542 = vld [vmem:[%s3 + $0x130] sm:$0xff]
  %v543 = vld [vmem:[%s3 + $0x138] sm:$0xff]
  %v544 = vld [vmem:[%s3 + $0x140] sm:$0xff]
  %v545 = vld [vmem:[%s3 + $0x148] sm:$0xff]
  %v546 = vld [vmem:[%s3 + $0x150] sm:$0xff]
  %v547 = vld [vmem:[%s3 + $0x158] sm:$0xff]
  %v548 = vld [vmem:[%s3 + $0x160] sm:$0xff]
  %v549 = vld [vmem:[%s3 + $0x168] sm:$0xff]
  %v550 = vld [vmem:[%s3 + $0x170] sm:$0xff]
  %v551 = vld [vmem:[%s3 + $0x178] sm:$0xff]
  %v552 = vld [vmem:[%s3 + $0x180] sm:$0xff]
  %v553 = vld [vmem:[%s3 + $0x188] sm:$0xff]
  %v554 = vld [vmem:[%s3 + $0x190] sm:$0xff]
  %v555 = vld [vmem:[%s3 + $0x198] sm:$0xff]
  %v556 = vld [vmem:[%s3 + $0x1a0] sm:$0xff]
  %v557 = vld [vmem:[%s3 + $0x1a8] sm:$0xff]
  %v558 = vld [vmem:[%s3 + $0x1b0] sm:$0xff]
  %v559 = vld [vmem:[%s3 + $0x1b8] sm:$0xff]
  %v560 = vld [vmem:[%s3 + $0x1c0] sm:$0xff]
  %v561 = vld [vmem:[%s3 + $0x1c8] sm:$0xff]
  %v562 = vld [vmem:[%s3 + $0x1d0] sm:$0xff]
  %v563 = vld [vmem:[%s3 + $0x1d8] sm:$0xff]
  %v564 = vld [vmem:[%s3 + $0x1e0] sm:$0xff]
  %v565 = vld [vmem:[%s3 + $0x1e8] sm:$0xff]
  %v566 = vld [vmem:[%s3 + $0x1f0] sm:$0xff]
  %v567 = vld [vmem:[%s3 + $0x1f8] sm:$0xff]
  %v568 = vld [vmem:[%s3 + $0x200] sm:$0xff]
  %v569 = vld [vmem:[%s3 + $0x208] sm:$0xff]
  %v570 = vld [vmem:[%s3 + $0x210] sm:$0xff]
  %v571 = vld [vmem:[%s3 + $0x218] sm:$0xff]
  %v572 = vld [vmem:[%s3 + $0x220] sm:$0xff]
  %v573 = vld [vmem:[%s3 + $0x228] sm:$0xff]
  %v574 = vld [vmem:[%s3 + $0x230] sm:$0xff]
  %v575 = vld [vmem:[%s3 + $0x238] sm:$0xff]
  %v576 = vld [vmem:[%s3 + $0x240] sm:$0xff]
  %v577 = vld [vmem:[%s3 + $0x248] sm:$0xff]
  %v578 = vld [vmem:[%s3 + $0x250] sm:$0xff]
  %v579 = vld [vmem:[%s3 + $0x258] sm:$0xff]
  %v580 = vld [vmem:[%s3 + $0x260] sm:$0xff]
  %v581 = vld [vmem:[%s3 + $0x268] sm:$0xff]
  %v582 = vld [vmem:[%s3 + $0x270] sm:$0xff]
  %v583 = vld [vmem:[%s3 + $0x278] sm:$0xff]
  %584 = vmatprep.subr.mxu0 0.0
  %585 = vmatpush1.msra.mxu0 %v504
  %586 = vmatprep.subr.mxu0 0.0
  %587 = vmatpush1.msra.mxu0 %v505
  %588 = vmatprep.subr.mxu0 0.0
  %589 = vmatpush1.msra.mxu0 %v506
  %590 = vmatprep.subr.mxu0 0.0
  %591 = vmatpush1.msra.mxu0 %v507
  %592 = vmatprep.subr.mxu0 0.0
  %593 = vmatpush1.msra.mxu0 %v508
  %594 = vmatprep.subr.mxu0 0.0
  %595 = vmatpush1.msra.mxu0 %v509
  %596 = vmatprep.subr.mxu0 0.0
  %597 = vmatpush1.msra.mxu0 %v510
  %598 = vmatprep.subr.mxu0 0.0
  %599 = vmatpush1.msra.mxu0 %v511
  %600 = vmatprep.subr.mxu0 0.0
  %601 = vmatpush1.msra.mxu0 %v512
  %602 = vmatprep.subr.mxu0 0.0
  %603 = vmatpush1.msra.mxu0 %v513
  %604 = vmatprep.subr.mxu0 0.0
  %605 = vmatpush1.msra.mxu0 %v514
  %606 = vmatprep.subr.mxu0 0.0
  %607 = vmatpush1.msra.mxu0 %v515
  %608 = vmatprep.subr.mxu0 0.0
  %609 = vmatpush1.msra.mxu0 %v516
  %610 = vmatprep.subr.mxu0 0.0
  %611 = vmatpush1.msra.mxu0 %v517
  %612 = vmatprep.subr.mxu0 0.0
  %613 = vmatpush1.msra.mxu0 %v518
  %614 = vmatprep.subr.mxu0 0.0
  %615 = vmatpush1.msra.mxu0 %v519
  %616 = vmatprep.subr.mxu0 0.0
  %617 = vmatpush1.msra.mxu0 %v520
  %618 = vmatprep.subr.mxu0 0.0
  %619 = vmatpush1.msra.mxu0 %v521
  %620 = vmatprep.subr.mxu0 0.0
  %621 = vmatpush1.msra.mxu0 %v522
  %622 = vmatprep.subr.mxu0 0.0
  %623 = vmatpush1.msra.mxu0 %v523
  %624 = vmatprep.subr.mxu0 0.0
  %625 = vmatpush1.msra.mxu0 %v524
  %626 = vmatprep.subr.mxu0 0.0
  %627 = vmatpush1.msra.mxu0 %v525
  %628 = vmatprep.subr.mxu0 0.0
  %629 = vmatpush1.msra.mxu0 %v526
  %630 = vmatprep.subr.mxu0 0.0
  %631 = vmatpush1.msra.mxu0 %v527
  %632 = vmatprep.subr.mxu0 0.0
  %633 = vmatpush1.msra.mxu0 %v528
  %634 = vmatprep.subr.mxu0 0.0
  %635 = vmatpush1.msra.mxu0 %v529
  %636 = vmatprep.subr.mxu0 0.0
  %637 = vmatpush1.msra.mxu0 %v530
  %638 = vmatprep.subr.mxu0 0.0
  %639 = vmatpush1.msra.mxu0 %v531
  %640 = vmatprep.subr.mxu0 0.0
  %641 = vmatpush1.msra.mxu0 %v532
  %642 = vmatprep.subr.mxu0 0.0
  %643 = vmatpush1.msra.mxu0 %v533
  %644 = vmatprep.subr.mxu0 0.0
  %645 = vmatpush1.msra.mxu0 %v534
  %646 = vmatprep.subr.mxu0 0.0
  %647 = vmatpush1.msra.mxu0 %v535
  %648 = vmatprep.mubr.f32.mxu0 %v490
  %649 = vmatmul.mubr.f32.gmra.mrb[0].mxu0 %v489
  %v650 = vpop.f32.mrb[0].mxu0
  %v651 = vadd.f32 0.0, %v650
  %v652 = vpop.f32.mrb[0].mxu0
  %653 = vmatprep.mubr.f32.mxu0 %v495
  %654 = vmatmul.mubr.f32.gmra.mrb[0].mxu0 %v494
  %v655 = vpop.f32.mrb[0].mxu0
  %v656 = vadd.f32 0.0, %v655
  %v657 = vpop.f32.mrb[0].mxu0
  %658 = vmatprep.mubr.f32.mxu0 %v500
  %659 = vmatmul.mubr.f32.gmra.mrb[0].mxu0 %v499
  %v660 = vpop.f32.mrb[0].mxu0
  %v661 = vadd.f32 0.0, %v660
  %v662 = vpop.f32.mrb[0].mxu0
  %663 = vdwg.mxu0
  %664 = vmatprep.subr.mxu0 0.0
  %665 = vmatpush1.msra.mxu0 %v536
  %666 = vmatprep.subr.mxu0 0.0
  %667 = vmatpush1.msra.mxu0 %v537
  %668 = vmatprep.subr.mxu0 0.0
  %669 = vmatpush1.msra.mxu0 %v538
  %670 = vmatprep.subr.mxu0 0.0
  %671 = vmatpush1.msra.mxu0 %v539
  %672 = vmatprep.subr.mxu0 0.0
  %673 = vmatpush1.msra.mxu0 %v540
  %674 = vmatprep.subr.mxu0 0.0
  %675 = vmatpush1.msra.mxu0 %v541
  %676 = vmatprep.subr.mxu0 0.0
  %677 = vmatpush1.msra.mxu0 %v542
  %678 = vmatprep.subr.mxu0 0.0
  %679 = vmatpush1.msra.mxu0 %v543
  %680 = vmatprep.subr.mxu0 0.0
  %681 = vmatpush1.msra.mxu0 %v544
  %682 = vmatprep.subr.mxu0 0.0
  %683 = vmatpush1.msra.mxu0 %v545
  %684 = vmatprep.subr.mxu0 0.0
  %685 = vmatpush1.msra.mxu0 %v546
  %686 = vmatprep.subr.mxu0 0.0
  %687 = vmatpush1.msra.mxu0 %v547
  %688 = vmatprep.subr.mxu0 0.0
  %689 = vmatpush1.msra.mxu0 %v548
  %690 = vmatprep.subr.mxu0 0.0
  %691 = vmatpush1.msra.mxu0 %v549
  %692 = vmatprep.subr.mxu0 0.0
  %693 = vmatpush1.msra.mxu0 %v550
  %694 = vmatprep.subr.mxu0 0.0
  %695 = vmatpush1.msra.mxu0 %v551
  %696 = vmatprep.subr.mxu0 0.0
  %697 = vmatpush1.msra.mxu0 %v552
  %698 = vmatprep.subr.mxu0 0.0
  %699 = vmatpush1.msra.mxu0 %v553
  %700 = vmatprep.subr.mxu0 0.0
  %701 = vmatpush1.msra.mxu0 %v554
  %702 = vmatprep.subr.mxu0 0.0
  %703 = vmatpush1.msra.mxu0 %v555
  %704 = vmatprep.subr.mxu0 0.0
  %705 = vmatpush1.msra.mxu0 %v556
  %706 = vmatprep.subr.mxu0 0.0
  %707 = vmatpush1.msra.mxu0 %v557
  %708 = vmatprep.subr.mxu0 0.0
  %709 = vmatpush1.msra.mxu0 %v558
  %710 = vmatprep.subr.mxu0 0.0
  %711 = vmatpush1.msra.mxu0 %v559
  %712 = vmatprep.subr.mxu0 0.0
  %713 = vmatpush1.msra.mxu0 %v560
  %714 = vmatprep.subr.mxu0 0.0
  %715 = vmatpush1.msra.mxu0 %v561
  %716 = vmatprep.subr.mxu0 0.0
  %717 = vmatpush1.msra.mxu0 %v562
  %718 = vmatprep.subr.mxu0 0.0
  %719 = vmatpush1.msra.mxu0 %v563
  %720 = vmatprep.subr.mxu0 0.0
  %721 = vmatpush1.msra.mxu0 %v564
  %722 = vmatprep.subr.mxu0 0.0
  %723 = vmatpush1.msra.mxu0 %v565
  %724 = vmatprep.subr.mxu0 0.0
  %725 = vmatpush1.msra.mxu0 %v566
  %726 = vmatprep.subr.mxu0 0.0
  %727 = vmatpush1.msra.mxu0 %v567
  %728 = vmatprep.mubr.f32.mxu0 %v492
  %729 = vmatmul.mubr.f32.gmra.mrb[0].mxu0 %v491
  %v730 = vpop.f32.mrb[0].mxu0
  %v731 = vadd.f32 %v651, %v730
  %v732 = vpop.f32.mrb[0].mxu0
  %733 = vmatprep.mubr.f32.mxu0 %v497
  %734 = vmatmul.mubr.f32.gmra.mrb[0].mxu0 %v496
  %v735 = vpop.f32.mrb[0].mxu0
  %v736 = vadd.f32 %v656, %v735
  %v737 = vpop.f32.mrb[0].mxu0
  %738 = vmatprep.mubr.f32.mxu0 %v502
  %739 = vmatmul.mubr.f32.gmra.mrb[0].mxu0 %v501
  %v740 = vpop.f32.mrb[0].mxu0
  %v741 = vadd.f32 %v661, %v740
  %v742 = vpop.f32.mrb[0].mxu0
  %743 = vdwg.mxu0
  %744 = vmatprep.subr.mxu0 0.0
  %745 = vmatpush1.msra.mxu0 %v568
  %746 = vmatprep.subr.mxu0 0.0
  %747 = vmatpush1.msra.mxu0 %v569
  %748 = vmatprep.subr.mxu0 0.0
  %749 = vmatpush1.msra.mxu0 %v570
  %750 = vmatprep.subr.mxu0 0.0
  %751 = vmatpush1.msra.mxu0 %v571
  %752 = vmatprep.subr.mxu0 0.0
  %753 = vmatpush1.msra.mxu0 %v572
  %754 = vmatprep.subr.mxu0 0.0
  %755 = vmatpush1.msra.mxu0 %v573
  %756 = vmatprep.subr.mxu0 0.0
  %757 = vmatpush1.msra.mxu0 %v574
  %758 = vmatprep.subr.mxu0 0.0
  %759 = vmatpush1.msra.mxu0 %v575
  %760 = vmatprep.subr.mxu0 0.0
  %761 = vmatpush1.msra.mxu0 %v576
  %762 = vmatprep.subr.mxu0 0.0
  %763 = vmatpush1.msra.mxu0 %v577
  %764 = vmatprep.subr.mxu0 0.0
  %765 = vmatpush1.msra.mxu0 %v578
  %766 = vmatprep.subr.mxu0 0.0
  %767 = vmatpush1.msra.mxu0 %v579
  %768 = vmatprep.subr.mxu0 0.0
  %769 = vmatpush1.msra.mxu0 %v580
  %770 = vmatprep.subr.mxu0 0.0
  %771 = vmatpush1.msra.mxu0 %v581
  %772 = vmatprep.subr.mxu0 0.0
  %773 = vmatpush1.msra.mxu0 %v582
  %774 = vmatprep.subr.mxu0 0.0
  %775 = vmatpush1.msra.mxu0 %v583
  %776 = vmatprep.subr.mxu0 0.0
  %777 = vmatpush1.msra.mxu0 0.0
  %778 = vmatprep.subr.mxu0 0.0
  %779 = vmatpush1.msra.mxu0 0.0
  %780 = vmatprep.subr.mxu0 0.0
  %781 = vmatpush1.msra.mxu0 0.0
  %782 = vmatprep.subr.mxu0 0.0
  %783 = vmatpush1.msra.mxu0 0.0
  %784 = vmatprep.subr.mxu0 0.0
  %785 = vmatpush1.msra.mxu0 0.0
  %786 = vmatprep.subr.mxu0 0.0
  %787 = vmatpush1.msra.mxu0 0.0
  %788 = vmatprep.subr.mxu0 0.0
  %789 = vmatpush1.msra.mxu0 0.0
  %790 = vmatprep.subr.mxu0 0.0
  %791 = vmatpush1.msra.mxu0 0.0
  %792 = vmatprep.subr.mxu0 0.0
  %793 = vmatpush1.msra.mxu0 0.0
  %794 = vmatprep.subr.mxu0 0.0
  %795 = vmatpush1.msra.mxu0 0.0
  %796 = vmatprep.subr.mxu0 0.0
  %797 = vmatpush1.msra.mxu0 0.0
  %798 = vmatprep.subr.mxu0 0.0
  %799 = vmatpush1.msra.mxu0 0.0
  %800 = vmatprep.subr.mxu0 0.0
  %801 = vmatpush1.msra.mxu0 0.0
  %802 = vmatprep.subr.mxu0 0.0
  %803 = vmatpush1.msra.mxu0 0.0
  %804 = vmatprep.subr.mxu0 0.0
  %805 = vmatpush1.msra.mxu0 0.0
  %806 = vmatprep.subr.mxu0 0.0
  %807 = vmatpush1.msra.mxu0 0.0
  %808 = vmatprep.mubr.f32.mxu0 0.0
  %809 = vmatmul.mubr.f32.gmra.mrb[0].mxu0 %v493
  %v810 = vpop.f32.mrb[0].mxu0
  %v811 = vadd.f32 %v731, %v810
  %v812 = vpop.f32.mrb[0].mxu0
  %813 = vmatprep.mubr.f32.mxu0 0.0
  %814 = vmatmul.mubr.f32.gmra.mrb[0].mxu0 %v498
  %v815 = vpop.f32.mrb[0].mxu0
  %v816 = vadd.f32 %v736, %v815
  %v817 = vpop.f32.mrb[0].mxu0
  %818 = vmatprep.mubr.f32.mxu0 0.0
  %819 = vmatmul.mubr.f32.gmra.mrb[0].mxu0 %v503
  %v820 = vpop.f32.mrb[0].mxu0
  %v821 = vadd.f32 %v741, %v820
  %v822 = vpop.f32.mrb[0].mxu0
  %823 = vdwg.mxu0
  %824 = vrot.lane.b32.xlu0 %v46, 96
  %v825 = vpop.permute.xlu0 %824
  %vm827 = vcmask 162816
  %v829 = vsel %vm827, %v811, 0
  %v832 = vsel %vm827, %v816, 0
  %v835 = vsel %vm827, %v821, 0
  %vm837 = vcmask 1043456
  %v839 = vsel %vm837, %v41, 0
  %841 = vmatprep.subr.mxu0 0.0
  %842 = vmatpush1.msra.mxu0 %v39
  %843 = vmatprep.subr.mxu0 0.0
  %844 = vmatpush1.msra.mxu0 %v40
  %845 = vmatprep.subr.mxu0 0.0
  %846 = vmatpush1.msra.mxu0 %v839
  %847 = vmatprep.subr.mxu0 0.0
  %848 = vmatpush1.msra.mxu0 0.0
  %849 = vmatprep.subr.mxu0 0.0
  %850 = vmatpush1.msra.mxu0 0.0
  %851 = vmatprep.subr.mxu0 0.0
  %852 = vmatpush1.msra.mxu0 0.0
  %853 = vmatprep.subr.mxu0 0.0
  %854 = vmatpush1.msra.mxu0 0.0
  %855 = vmatprep.subr.mxu0 0.0
  %856 = vmatpush1.msra.mxu0 0.0
  %857 = vmatprep.subr.mxu0 0.0
  %858 = vmatpush1.msra.mxu0 0.0
  %859 = vmatprep.subr.mxu0 0.0
  %860 = vmatpush1.msra.mxu0 0.0
  %861 = vmatprep.subr.mxu0 0.0
  %862 = vmatpush1.msra.mxu0 0.0
  %863 = vmatprep.subr.mxu0 0.0
  %864 = vmatpush1.msra.mxu0 0.0
  %865 = vmatprep.subr.mxu0 0.0
  %866 = vmatpush1.msra.mxu0 0.0
  %867 = vmatprep.subr.mxu0 0.0
  %868 = vmatpush1.msra.mxu0 0.0
  %869 = vmatprep.subr.mxu0 0.0
  %870 = vmatpush1.msra.mxu0 0.0
  %871 = vmatprep.subr.mxu0 0.0
  %872 = vmatpush1.msra.mxu0 0.0
  %873 = vmatprep.subr.mxu0 0.0
  %874 = vmatpush1.msra.mxu0 0.0
  %875 = vmatprep.subr.mxu0 0.0
  %876 = vmatpush1.msra.mxu0 0.0
  %877 = vmatprep.subr.mxu0 0.0
  %878 = vmatpush1.msra.mxu0 0.0
  %879 = vmatprep.subr.mxu0 0.0
  %880 = vmatpush1.msra.mxu0 0.0
  %881 = vmatprep.subr.mxu0 0.0
  %882 = vmatpush1.msra.mxu0 0.0
  %883 = vmatprep.subr.mxu0 0.0
  %884 = vmatpush1.msra.mxu0 0.0
  %885 = vmatprep.subr.mxu0 0.0
  %886 = vmatpush1.msra.mxu0 0.0
  %887 = vmatprep.subr.mxu0 0.0
  %888 = vmatpush1.msra.mxu0 0.0
  %889 = vmatprep.subr.mxu0 0.0
  %890 = vmatpush1.msra.mxu0 0.0
  %891 = vmatprep.subr.mxu0 0.0
  %892 = vmatpush1.msra.mxu0 0.0
  %893 = vmatprep.subr.mxu0 0.0
  %894 = vmatpush1.msra.mxu0 0.0
  %895 = vmatprep.subr.mxu0 0.0
  %896 = vmatpush1.msra.mxu0 0.0
  %897 = vmatprep.subr.mxu0 0.0
  %898 = vmatpush1.msra.mxu0 0.0
  %899 = vmatprep.subr.mxu0 0.0
  %900 = vmatpush1.msra.mxu0 0.0
  %901 = vmatprep.subr.mxu0 0.0
  %902 = vmatpush1.msra.mxu0 0.0
  %903 = vmatprep.subr.mxu0 0.0
  %904 = vmatpush1.msra.mxu0 0.0
  %905 = vmatprep.mubr.f32.mxu0 0.0
  %906 = vmatmul.mubr.f32.gmra.mrb[0].mxu0 %v829
  %v907 = vpop.f32.mrb[0].mxu0
  %v908 = vadd.f32 %v825, %v907
  %v909 = vpop.f32.mrb[0].mxu0
  %910 = vmatprep.mubr.f32.mxu0 0.0
  %911 = vmatmul.mubr.f32.gmra.mrb[0].mxu0 %v832
  %v912 = vpop.f32.mrb[0].mxu0
  %v913 = vadd.f32 %v825, %v912
  %v914 = vpop.f32.mrb[0].mxu0
  %915 = vmatprep.mubr.f32.mxu0 0.0
  %916 = vmatmul.mubr.f32.gmra.mrb[0].mxu0 %v835
  %v917 = vpop.f32.mrb[0].mxu0
  %v918 = vadd.f32 %v825, %v917
  %v919 = vpop.f32.mrb[0].mxu0
  %920 = vdwg.mxu0
  %v921 = vmax.f32 %v908, 0.0
  %v922 = vmax.f32 %v913, 0.0
  %v923 = vmax.f32 %v918, 0.0
  %926 = vrot.lane.b32.xlu0 %v39, 108
  %v927 = vpop.permute.xlu0 %926
  %928 = vrot.lane.b32.xlu0 %v40, 108
  %v929 = vpop.permute.xlu0 %928
  %930 = vrot.lane.b32.xlu0 %v41, 108
  %v931 = vpop.permute.xlu0 %930
  %934 = vrot.lane.b32.xlu0 %v46, 76
  %v935 = vpop.permute.xlu0 %934
  %v938 = vsel %vm827, %v921, 0
  %v941 = vsel %vm827, %v922, 0
  %v944 = vsel %vm827, %v923, 0
  %v946 = vsel %vm837, %v931, 0
  %948 = vmatprep.subr.mxu0 0.0
  %949 = vmatpush1.msra.mxu0 %v927
  %950 = vmatprep.subr.mxu0 0.0
  %951 = vmatpush1.msra.mxu0 %v929
  %952 = vmatprep.subr.mxu0 0.0
  %953 = vmatpush1.msra.mxu0 %v946
  %954 = vmatprep.subr.mxu0 0.0
  %955 = vmatpush1.msra.mxu0 0.0
  %956 = vmatprep.subr.mxu0 0.0
  %957 = vmatpush1.msra.mxu0 0.0
  %958 = vmatprep.subr.mxu0 0.0
  %959 = vmatpush1.msra.mxu0 0.0
  %960 = vmatprep.subr.mxu0 0.0
  %961 = vmatpush1.msra.mxu0 0.0
  %962 = vmatprep.subr.mxu0 0.0
  %963 = vmatpush1.msra.mxu0 0.0
  %964 = vmatprep.subr.mxu0 0.0
  %965 = vmatpush1.msra.mxu0 0.0
  %966 = vmatprep.subr.mxu0 0.0
  %967 = vmatpush1.msra.mxu0 0.0
  %968 = vmatprep.subr.mxu0 0.0
  %969 = vmatpush1.msra.mxu0 0.0
  %970 = vmatprep.subr.mxu0 0.0
  %971 = vmatpush1.msra.mxu0 0.0
  %972 = vmatprep.subr.mxu0 0.0
  %973 = vmatpush1.msra.mxu0 0.0
  %974 = vmatprep.subr.mxu0 0.0
  %975 = vmatpush1.msra.mxu0 0.0
  %976 = vmatprep.subr.mxu0 0.0
  %977 = vmatpush1.msra.mxu0 0.0
  %978 = vmatprep.subr.mxu0 0.0
  %979 = vmatpush1.msra.mxu0 0.0
  %980 = vmatprep.subr.mxu0 0.0
  %981 = vmatpush1.msra.mxu0 0.0
  %982 = vmatprep.subr.mxu0 0.0
  %983 = vmatpush1.msra.mxu0 0.0
  %984 = vmatprep.subr.mxu0 0.0
  %985 = vmatpush1.msra.mxu0 0.0
  %986 = vmatprep.subr.mxu0 0.0
  %987 = vmatpush1.msra.mxu0 0.0
  %988 = vmatprep.subr.mxu0 0.0
  %989 = vmatpush1.msra.mxu0 0.0
  %990 = vmatprep.subr.mxu0 0.0
  %991 = vmatpush1.msra.mxu0 0.0
  %992 = vmatprep.subr.mxu0 0.0
  %993 = vmatpush1.msra.mxu0 0.0
  %994 = vmatprep.subr.mxu0 0.0
  %995 = vmatpush1.msra.mxu0 0.0
  %996 = vmatprep.subr.mxu0 0.0
  %997 = vmatpush1.msra.mxu0 0.0
  %998 = vmatprep.subr.mxu0 0.0
  %999 = vmatpush1.msra.mxu0 0.0
  %1000 = vmatprep.subr.mxu0 0.0
  %1001 = vmatpush1.msra.mxu0 0.0
  %1002 = vmatprep.subr.mxu0 0.0
  %1003 = vmatpush1.msra.mxu0 0.0
  %1004 = vmatprep.subr.mxu0 0.0
  %1005 = vmatpush1.msra.mxu0 0.0
  %1006 = vmatprep.subr.mxu0 0.0
  %1007 = vmatpush1.msra.mxu0 0.0
  %1008 = vmatprep.subr.mxu0 0.0
  %1009 = vmatpush1.msra.mxu0 0.0
  %1010 = vmatprep.subr.mxu0 0.0
  %1011 = vmatpush1.msra.mxu0 0.0
  %1012 = vmatprep.mubr.f32.mxu0 0.0
  %1013 = vmatmul.mubr.f32.gmra.mrb[0].mxu0 %v938
  %v1014 = vpop.f32.mrb[0].mxu0
  %v1015 = vadd.f32 %v935, %v1014
  %v1016 = vpop.f32.mrb[0].mxu0
  %1017 = vmatprep.mubr.f32.mxu0 0.0
  %1018 = vmatmul.mubr.f32.gmra.mrb[0].mxu0 %v941
  %v1019 = vpop.f32.mrb[0].mxu0
  %v1020 = vadd.f32 %v935, %v1019
  %v1021 = vpop.f32.mrb[0].mxu0
  %1022 = vmatprep.mubr.f32.mxu0 0.0
  %1023 = vmatmul.mubr.f32.gmra.mrb[0].mxu0 %v944
  %v1024 = vpop.f32.mrb[0].mxu0
  %v1025 = vadd.f32 %v935, %v1024
  %v1026 = vpop.f32.mrb[0].mxu0
  %1027 = vdwg.mxu0
  %1031 = vrot.lane.b32.xlu0 %v1015, 108
  %v1032 = vpop.permute.xlu0 %1031
  %1033 = vrot.lane.b32.xlu0 %v1020, 108
  %v1034 = vpop.permute.xlu0 %1033
  %1035 = vrot.lane.b32.xlu0 %v1025, 108
  %v1036 = vpop.permute.xlu0 %1035
  %v1040 = vmax.f32 %v1015, %v1032
  %v1041 = vmax.f32 %v1020, %v1034
  %v1042 = vmax.f32 %v1025, %v1036
  %1043 = vrot.lane.b32.xlu0 %v1015, 88
  %v1044 = vpop.permute.xlu0 %1043
  %1045 = vrot.lane.b32.xlu0 %v1020, 88
  %v1046 = vpop.permute.xlu0 %1045
  %1047 = vrot.lane.b32.xlu0 %v1025, 88
  %v1048 = vpop.permute.xlu0 %1047
  %v1052 = vmax.f32 %v1040, %v1044
  %v1053 = vmax.f32 %v1041, %v1046
  %v1054 = vmax.f32 %v1042, %v1048
  %1058 = vrot.lane.b32.xlu0 %v1052, 20
  %v1059 = vpop.permute.xlu0 %1058
  %1060 = vrot.lane.b32.xlu0 %v1053, 20
  %v1061 = vpop.permute.xlu0 %1060
  %1062 = vrot.lane.b32.xlu0 %v1054, 20
  %v1063 = vpop.permute.xlu0 %1062
  %1067 = vrot.lane.b32.xlu0 %v1052, 40
  %v1068 = vpop.permute.xlu0 %1067
  %1069 = vrot.lane.b32.xlu0 %v1053, 40
  %v1070 = vpop.permute.xlu0 %1069
  %1071 = vrot.lane.b32.xlu0 %v1054, 40
  %v1072 = vpop.permute.xlu0 %1071
  %v1076 = vsel %vm827, %v1052, %v1059
  %v1077 = vsel %vm827, %v1053, %v1061
  %v1078 = vsel %vm827, %v1054, %v1063
  %vm1079 = vcmask 326656
  %v1080 = vsel %vm1079, %v1076, %v1068
  %v1081 = vsel %vm1079, %v1077, %v1070
  %v1082 = vsel %vm1079, %v1078, %v1072
  %v1083 = vsub.f32 %v1015, %v1080
  %v1084 = vsub.f32 %v1020, %v1081
  %v1085 = vsub.f32 %v1025, %v1082
  %v1086 = vmul.f32 %v1083, 1.442695
  %v1087 = vpow.pop %v1086
  %v1088 = vmul.f32 %v1084, 1.442695
  %v1089 = vpow.pop %v1088
  %v1090 = vmul.f32 %v1085, 1.442695
  %v1091 = vpow.pop %v1090
  %1095 = vrot.lane.b32.xlu0 %v1087, 108
  %v1096 = vpop.permute.xlu0 %1095
  %1097 = vrot.lane.b32.xlu0 %v1089, 108
  %v1098 = vpop.permute.xlu0 %1097
  %1099 = vrot.lane.b32.xlu0 %v1091, 108
  %v1100 = vpop.permute.xlu0 %1099
  %v1104 = vadd.f32 %v1087, %v1096
  %v1105 = vadd.f32 %v1089, %v1098
  %v1106 = vadd.f32 %v1091, %v1100
  %1107 = vrot.lane.b32.xlu0 %v1087, 88
  %v1108 = vpop.permute.xlu0 %1107
  %1109 = vrot.lane.b32.xlu0 %v1089, 88
  %v1110 = vpop.permute.xlu0 %1109
  %1111 = vrot.lane.b32.xlu0 %v1091, 88
  %v1112 = vpop.permute.xlu0 %1111
  %v1116 = vadd.f32 %v1104, %v1108
  %v1117 = vadd.f32 %v1105, %v1110
  %v1118 = vadd.f32 %v1106, %v1112
  %v1119 = vrcp.pop %v1116
  %v1120 = vrcp.pop %v1117
  %v1121 = vrcp.pop %v1118
  %1125 = vrot.lane.b32.xlu0 %v1119, 20
  %v1126 = vpop.permute.xlu0 %1125
  %1127 = vrot.lane.b32.xlu0 %v1120, 20
  %v1128 = vpop.permute.xlu0 %1127
  %1129 = vrot.lane.b32.xlu0 %v1121, 20
  %v1130 = vpop.permute.xlu0 %1129
  %1134 = vrot.lane.b32.xlu0 %v1119, 40
  %v1135 = vpop.permute.xlu0 %1134
  %1136 = vrot.lane.b32.xlu0 %v1120, 40
  %v1137 = vpop.permute.xlu0 %1136
  %1138 = vrot.lane.b32.xlu0 %v1121, 40
  %v1139 = vpop.permute.xlu0 %1138
  %v1143 = vsel %vm827, %v1119, %v1126
  %v1144 = vsel %vm827, %v1120, %v1128
  %v1145 = vsel %vm827, %v1121, %v1130
  %v1146 = vsel %vm1079, %v1143, %v1135
  %v1147 = vsel %vm1079, %v1144, %v1137
  %v1148 = vsel %vm1079, %v1145, %v1139
  %v1149 = vmul.f32 %v1087, %v1146
  %v1150 = vmul.f32 %v1089, %v1147
  %v1151 = vmul.f32 %v1091, %v1148
  %v1152 = vld [vmem:[%s5] sm:$0xff]
  %v1153 = vld [vmem:[%s5 + $0x8] sm:$0xff]
  %v1154 = vld [vmem:[%s5 + $0x10] sm:$0xff]
  %v1155 = vld [vmem:[%s5 + $0x18] sm:$0xff]
  %v1156 = vld [vmem:[%s5 + $0x20] sm:$0xff]
  %v1157 = vld [vmem:[%s5 + $0x28] sm:$0xff]
  %v1158 = vld [vmem:[%s5 + $0x30] sm:$0xff]
  %v1159 = vld [vmem:[%s5 + $0x38] sm:$0xf]
  %vm1160 = vcmask 490496
  %v1162 = vsel %vm1160, %v1149, 0
  %v1165 = vsel %vm1160, %v1150, 0
  %v1168 = vsel %vm1160, %v1151, 0
  %v1171 = vsel %vm837, %v1159, 0
  %1173 = vmatprep.subr.mxu0 0.0
  %1174 = vmatpush1.msra.mxu0 %v1152
  %1175 = vmatprep.subr.mxu0 0.0
  %1176 = vmatpush1.msra.mxu0 %v1153
  %1177 = vmatprep.subr.mxu0 0.0
  %1178 = vmatpush1.msra.mxu0 %v1154
  %1179 = vmatprep.subr.mxu0 0.0
  %1180 = vmatpush1.msra.mxu0 %v1155
  %1181 = vmatprep.subr.mxu0 0.0
  %1182 = vmatpush1.msra.mxu0 %v1156
  %1183 = vmatprep.subr.mxu0 0.0
  %1184 = vmatpush1.msra.mxu0 %v1157
  %1185 = vmatprep.subr.mxu0 0.0
  %1186 = vmatpush1.msra.mxu0 %v1158
  %1187 = vmatprep.subr.mxu0 0.0
  %1188 = vmatpush1.msra.mxu0 %v1171
  %1189 = vmatprep.subr.mxu0 0.0
  %1190 = vmatpush1.msra.mxu0 0.0
  %1191 = vmatprep.subr.mxu0 0.0
  %1192 = vmatpush1.msra.mxu0 0.0
  %1193 = vmatprep.subr.mxu0 0.0
  %1194 = vmatpush1.msra.mxu0 0.0
  %1195 = vmatprep.subr.mxu0 0.0
  %1196 = vmatpush1.msra.mxu0 0.0
  %1197 = vmatprep.subr.mxu0 0.0
  %1198 = vmatpush1.msra.mxu0 0.0
  %1199 = vmatprep.subr.mxu0 0.0
  %1200 = vmatpush1.msra.mxu0 0.0
  %1201 = vmatprep.subr.mxu0 0.0
  %1202 = vmatpush1.msra.mxu0 0.0
  %1203 = vmatprep.subr.mxu0 0.0
  %1204 = vmatpush1.msra.mxu0 0.0
  %1205 = vmatprep.subr.mxu0 0.0
  %1206 = vmatpush1.msra.mxu0 0.0
  %1207 = vmatprep.subr.mxu0 0.0
  %1208 = vmatpush1.msra.mxu0 0.0
  %1209 = vmatprep.subr.mxu0 0.0
  %1210 = vmatpush1.msra.mxu0 0.0
  %1211 = vmatprep.subr.mxu0 0.0
  %1212 = vmatpush1.msra.mxu0 0.0
  %1213 = vmatprep.subr.mxu0 0.0
  %1214 = vmatpush1.msra.mxu0 0.0
  %1215 = vmatprep.subr.mxu0 0.0
  %1216 = vmatpush1.msra.mxu0 0.0
  %1217 = vmatprep.subr.mxu0 0.0
  %1218 = vmatpush1.msra.mxu0 0.0
  %1219 = vmatprep.subr.mxu0 0.0
  %1220 = vmatpush1.msra.mxu0 0.0
  %1221 = vmatprep.subr.mxu0 0.0
  %1222 = vmatpush1.msra.mxu0 0.0
  %1223 = vmatprep.subr.mxu0 0.0
  %1224 = vmatpush1.msra.mxu0 0.0
  %1225 = vmatprep.subr.mxu0 0.0
  %1226 = vmatpush1.msra.mxu0 0.0
  %1227 = vmatprep.subr.mxu0 0.0
  %1228 = vmatpush1.msra.mxu0 0.0
  %1229 = vmatprep.subr.mxu0 0.0
  %1230 = vmatpush1.msra.mxu0 0.0
  %1231 = vmatprep.subr.mxu0 0.0
  %1232 = vmatpush1.msra.mxu0 0.0
  %1233 = vmatprep.subr.mxu0 0.0
  %1234 = vmatpush1.msra.mxu0 0.0
  %1235 = vmatprep.subr.mxu0 0.0
  %1236 = vmatpush1.msra.mxu0 0.0
  %1237 = vmatprep.mubr.f32.mxu0 0.0
  %1238 = vmatmul.mubr.f32.gmra.mrb[0].mxu0 %v1162
  %v1239 = vpop.f32.mrb[0].mxu0
  %v1240 = vadd.f32 0.0, %v1239
  %v1241 = vpop.f32.mrb[0].mxu0
  %1242 = vmatprep.mubr.f32.mxu0 0.0
  %1243 = vmatmul.mubr.f32.gmra.mrb[0].mxu0 %v1165
  %v1244 = vpop.f32.mrb[0].mxu0
  %v1245 = vadd.f32 0.0, %v1244
  %v1246 = vpop.f32.mrb[0].mxu0
  %1247 = vmatprep.mubr.f32.mxu0 0.0
  %1248 = vmatmul.mubr.f32.gmra.mrb[0].mxu0 %v1168
  %v1249 = vpop.f32.mrb[0].mxu0
  %v1250 = vadd.f32 0.0, %v1249
  %v1251 = vpop.f32.mrb[0].mxu0
  %1252 = vdwg.mxu0
  %1253 = vst.msk [vmem:[%s6] sm:$0xff] %vm1160, %v1240
  %1254 = vst.msk [vmem:[%s6 + $0x8] sm:$0xff] %vm1160, %v1245
  %vm1255 = vcmask 486400
  %1256 = vst.msk [vmem:[%s6 + $0x10] sm:$0xf] %vm1255, %v1250
  // Predicated region
  $region26: #{edge_classifier_forward.1} parent=0 // pred_check
    _
  $region27: #{edge_classifier_forward.1} parent=0 // pred_check_branch
    %1258 = sbr.rel (0) target = $region29
  $region28: #{edge_classifier_forward.1} parent=0 // pred_region
    _
  $region29: #{edge_classifier_forward.1} parent=0 // pred_fallthru
    _
  // Predicated region
  $region30: #{edge_classifier_forward.1} parent=0 // pred_check
    _
  $region31: #{edge_classifier_forward.1} parent=0 // pred_check_branch
    %1260 = sbr.rel (0) target = $region33
  $region32: #{edge_classifier_forward.1} parent=0 // pred_region
    _
  $region33: #{edge_classifier_forward.1} parent=0 // pred_fallthru
    _

</llo_original>
